<compile_context>
chip_gen: v7x
topology: tpu7x:2x2x1
jax: 0.10.0
libtpu: 0.0.40
codegen_flags: <defaults>
</compile_context>

<pallas_src>
import jax
import jax.numpy as jnp
from jax import lax
from jax.experimental import pallas as pl
from jax.experimental.pallas import tpu as pltpu


_VMEM = pl.BlockSpec(memory_space=pltpu.MemorySpace.VMEM)


# --------------------------------------------------------------------------
# Fused Pallas kernel: LSTM recurrence (both branches) + masked mean + classify
# --------------------------------------------------------------------------
def ppinet_kernel(xg_ref, lens_ref, scale_ref, whh_ref, h0_ref, c0_ref,
                  wcls_ref, bcls_ref, out_ref):
    """Fused PPINet forward.

    xg_ref    : (T, R, 4H)  precomputed gate inputs emb_proj[x] (bias folded,
                            g-gate columns pre-scaled by 2)
    lens_ref  : (R, 1)      int32 valid lengths (branch-1 rows, branch-2, pad)
    scale_ref : (R, 1)      f32   0.5 / max(len_branch) per row (0 for pad)
    whh_ref   : (H, 4H)     hidden->hidden weights (pre-transposed, g cols x2)
    h0_ref    : (R, H)      initial hidden state
    c0_ref    : (R, H)      initial cell state
    wcls_ref  : (H, C)      classifier weight (pre-transposed)
    bcls_ref  : (1, C)      classifier bias
    out_ref   : (B, C)      logits
    """
    T = xg_ref.shape[0]
    R, H = h0_ref.shape          # R = 2B padded up to a multiple of 8
    B = out_ref.shape[0]

    # Hoisted once: weights, the lens broadcast, static gate-lane constants.
    whh = whh_ref[...]                                        # (H, 4H)
    lens_full = jnp.broadcast_to(lens_ref[...], (R, H))       # (R, H) int32
    lane = lax.broadcasted_iota(jnp.int32, (R, 4 * H), 1)
    g_lane = (lane >= 2 * H) & (lane < 3 * H)
    # tanh(x) = 2*sigmoid(2x) - 1; the x2 on the g-gate pre-activation was
    # folded into whh / xg in the wrapper -> one sigmoid pass + one fma here.
    act_mul = jnp.where(g_lane, jnp.float32(2.0), jnp.float32(1.0))
    act_add = jnp.where(g_lane, jnp.float32(-1.0), jnp.float32(0.0))

    def step(t, carry):
        h_prev, c_prev, acc = carry
        # Only the true recurrence matmul sits on the serial chain; the input
        # projection + bias were precomputed into xg_ref.
        # TODO(synk): hold whh in MXU weight regs explicitly via
        # pltpu.matmul_push_rhs/acc_lhs/pop once that staged-RHS path is
        # preferred; for now rely on Mosaic hoisting the constant RHS push.
        gates = xg_ref[t] + jnp.dot(h_prev, whh,
                                    preferred_element_type=jnp.float32)
        y = jax.nn.sigmoid(gates)                             # single EUP pass
        act = y * act_mul + act_add                           # tanh on g lanes
        i_g = act[:, 0:H]
        f_g = act[:, H:2 * H]
        g_g = act[:, 2 * H:3 * H]
        o_g = act[:, 3 * H:4 * H]
        c_new = f_g * c_prev + i_g * g_g
        h_new = o_g * jnp.tanh(c_new)
        # Full-width compare against the pre-broadcast lens (no per-step
        # broadcast_in_dim re-materialization under unroll=True).
        mask = (t < lens_full).astype(jnp.float32)
        return (h_new, c_new, acc + mask * h_new)

    init = (h0_ref[...], c0_ref[...], jnp.zeros((R, H), jnp.float32))
    _, _, acc = lax.fori_loop(0, T, step, init, unroll=True)

    # Epilogue: per-branch masked mean (0.5 folded into scale), branch average,
    # classifier — single HBM output store.
    sg = acc * scale_ref[...]                                 # (R, H)
    sg_mean = sg[0:B, :] + sg[B:2 * B, :]                     # (B, H)
    out_ref[...] = (jnp.dot(sg_mean, wcls_ref[...],
                            preferred_element_type=jnp.float32)
                    + bcls_ref[...])


def ppinet_pallas(xg_tm, lens, scale, whh_t, h0, c0, w_cls_t, b_cls, n_out):
    n_classes = w_cls_t.shape[1]
    # Gridless single launch: all operands fit VMEM at these shapes.  For
    # large batch/seqlen (or v7x's 64 MiB VMEM + 2 TCs), add a "parallel"
    # grid over the row axis with BlockSpecs on xg/lens/scale/h0/c0/out.
    return pl.pallas_call(
        ppinet_kernel,
        out_shape=jax.ShapeDtypeStruct((n_out, n_classes), jnp.float32),
        in_specs=[_VMEM] * 8,
        out_specs=_VMEM,
    )(xg_tm, lens, scale, whh_t, h0, c0, w_cls_t, b_cls)


# --------------------------------------------------------------------------
# Parameter construction (deterministic, in-script; replaces pickle load)
# --------------------------------------------------------------------------
def make_params(key, vocab_size, emb_dim, hidden_dim, n_classes):
    k_emb, k_wih, k_whh, k_bih, k_bhh, k_wc, k_bc = jax.random.split(key, 7)
    bound = 1.0 / jnp.sqrt(jnp.float32(hidden_dim))

    emb = jax.random.normal(k_emb, (vocab_size, emb_dim), jnp.float32)
    w_ih = jax.random.uniform(k_wih, (4 * hidden_dim, emb_dim), jnp.float32,
                              -bound, bound)
    w_hh = jax.random.uniform(k_whh, (4 * hidden_dim, hidden_dim), jnp.float32,
                              -bound, bound)
    b_ih = jax.random.uniform(k_bih, (4 * hidden_dim,), jnp.float32, -bound, bound)
    b_hh = jax.random.uniform(k_bhh, (4 * hidden_dim,), jnp.float32, -bound, bound)

    cls_in = hidden_dim                      # = output_dim // 2
    bound_c = 1.0 / jnp.sqrt(jnp.float32(cls_in))
    w_cls = jax.random.uniform(k_wc, (n_classes, cls_in), jnp.float32,
                               -bound_c, bound_c)
    b_cls = jax.random.uniform(k_bc, (n_classes,), jnp.float32, -bound_c, bound_c)

    return {
        "emb": emb,                              # (V, E)
        "wih_t": jnp.transpose(w_ih),            # (E, 4H)
        "whh_t": jnp.transpose(w_hh),            # (H, 4H)
        "bias": (b_ih + b_hh)[None, :],          # (1, 4H)
        "w_cls_t": jnp.transpose(w_cls),         # (cls_in, n_classes)
        "b_cls": b_cls[None, :],                 # (1, n_classes)
    }


# --------------------------------------------------------------------------
# PPINet forward (XLA glue: projected-embedding gather + branch fusion + pad)
# --------------------------------------------------------------------------
def ppinet_forward(params, x1, len1, x2, len2, h0_1, c0_1, h0_2, c0_2):
    B, T = x1.shape
    H = h0_1.shape[1]

    # tanh-as-sigmoid fold: scale the g-gate columns [2H, 3H) of every gate
    # pre-activation contribution by 2 (free, precomputed once).
    col = jnp.arange(4 * H)
    gate_scale = jnp.where((col >= 2 * H) & (col < 3 * H),
                           2.0, 1.0).astype(jnp.float32)[None, :]   # (1, 4H)

    # Hoisted input projection: the kernel never touches the E dimension.
    # (V,E)@(E,4H) + (b_ih + b_hh), then the g-gate fold.
    # bf16 operands here + for whh are an optional v6e/v7x MXU tweak; kept f32
    # for numerical parity with the f32 reference.
    emb_proj = (jnp.dot(params["emb"], params["wih_t"],
                        preferred_element_type=jnp.float32)
                + params["bias"]) * gate_scale                # (V, 4H)
    whh_scaled = params["whh_t"] * gate_scale                 # (H, 4H)

    # Fuse both branches along batch; gather directly into time-major layout.
    x_all = jnp.concatenate([x1, x2], axis=0)                 # (2B, T)
    xg_tm = jnp.take(emb_proj, x_all.T, axis=0)               # (T, 2B, 4H)

    lens_all = jnp.concatenate([len1, len2], axis=0).astype(jnp.int32)[:, None]

    # torch.mean over the padded time axis divides by max(len) of the branch;
    # fold in the 0.5 from mean(stack([sg1, sg2])).  Guard the degenerate
    # all-zero-length branch against divide-by-zero.
    inv1 = 0.5 / jnp.maximum(jnp.max(len1).astype(jnp.float32), 1.0)
    inv2 = 0.5 / jnp.maximum(jnp.max(len2).astype(jnp.float32), 1.0)
    scale = jnp.concatenate([jnp.broadcast_to(inv1, (B, 1)),
                             jnp.broadcast_to(inv2, (B, 1))],
                            axis=0).astype(jnp.float32)       # (2B, 1)

    h0 = jnp.concatenate([h0_1, h0_2], axis=0)                # (2B, H)
    c0 = jnp.concatenate([c0_1, c0_2], axis=0)                # (2B, H)

    # Pad fused rows up to the f32 sublane tile (multiple of 8) so the
    # recurrence runs on full vreg sublanes.  Padded rows: len=0, scale=0,
    # zero states/gate-inputs; they never reach the epilogue slice.
    rows = 2 * B
    rows_p = ((rows + 7) // 8) * 8
    pad = rows_p - rows
    if pad:
        xg_tm = jnp.pad(xg_tm, ((0, 0), (0, pad), (0, 0)))
        lens_all = jnp.pad(lens_all, ((0, pad), (0, 0)))
        scale = jnp.pad(scale, ((0, pad), (0, 0)))
        h0 = jnp.pad(h0, ((0, pad), (0, 0)))
        c0 = jnp.pad(c0, ((0, pad), (0, 0)))

    return ppinet_pallas(xg_tm, lens_all, scale, whh_scaled, h0, c0,
                         params["w_cls_t"], params["b_cls"], B)


# --------------------------------------------------------------------------
# Main
# --------------------------------------------------------------------------
if __name__ == "__main__":
    B, T = 2, 8           # batch, padded sequence length
    V, E = 64, 32         # vocab size, embedding dim (synthetic kmer embeddings)
    H = 32                # hidden_dim  (output_dim = 64, so classify in = 32)
    N_CLASSES = 2

    key = jax.random.PRNGKey(0)
    kp, kx1, kx2, kh1, kc1, kh2, kc2 = jax.random.split(key, 7)

    params = make_params(kp, V, E, H, N_CLASSES)

    x1 = jax.random.randint(kx1, (B, T), 0, V, dtype=jnp.int32)
    x2 = jax.random.randint(kx2, (B, T), 0, V, dtype=jnp.int32)
    len1 = jnp.array([6, 5], dtype=jnp.int32)
    len2 = jnp.array([8, 3], dtype=jnp.int32)

    # init_hidden() draws torch.randn per forward call; here deterministic.
    h0_1 = jax.random.normal(kh1, (B, H), jnp.float32)
    c0_1 = jax.random.normal(kc1, (B, H), jnp.float32)
    h0_2 = jax.random.normal(kh2, (B, H), jnp.float32)
    c0_2 = jax.random.normal(kc2, (B, H), jnp.float32)

    fwd = jax.jit(ppinet_forward)
    pred = fwd(params, x1, len1, x2, len2, h0_1, c0_1, h0_2, c0_2)
    jax.block_until_ready(pred)
    assert pred.shape == (B, N_CLASSES)
    print("KERNEL_OK")
</pallas_src>

<mosaic_0001>
module attributes {stable_mosaic.version = 11 : i64} {
  func.func @ppinet_kernel(%arg0: memref<8x8x128xf32, #tpu.memory_space<vmem>>, %arg1: memref<8x1xi32, #tpu.memory_space<vmem>>, %arg2: memref<8x1xf32, #tpu.memory_space<vmem>>, %arg3: memref<32x128xf32, #tpu.memory_space<vmem>>, %arg4: memref<8x32xf32, #tpu.memory_space<vmem>>, %arg5: memref<8x32xf32, #tpu.memory_space<vmem>>, %arg6: memref<32x2xf32, #tpu.memory_space<vmem>>, %arg7: memref<1x2xf32, #tpu.memory_space<vmem>>, %arg8: memref<2x2xf32, #tpu.memory_space<vmem>>) attributes {dimension_semantics = [], scalar_prefetch = 0 : i64, scratch_operands = 0 : i64, tpu.core_type = #tpu.core_type<tc>} {
    %c0 = arith.constant 0 : index
    %c0_0 = arith.constant 0 : index
    %0 = vector.load %arg3[%c0, %c0_0] : memref<32x128xf32, #tpu.memory_space<vmem>>, vector<32x128xf32>
    %c0_1 = arith.constant 0 : index
    %c0_2 = arith.constant 0 : index
    %1 = vector.load %arg1[%c0_1, %c0_2] : memref<8x1xi32, #tpu.memory_space<vmem>>, vector<8x1xi32>
    %2 = vector.shape_cast %1 : vector<8x1xi32> to vector<8x1xi32>
    %3 = vector.broadcast %2 : vector<8x1xi32> to vector<8x32xi32>
    %4 = tpu.iota {dimensions = array<i32: 1>} : vector<8x128xi32>
    %c64_i32 = arith.constant 64 : i32
    %5 = vector.broadcast %c64_i32 : i32 to vector<8x128xi32>
    %6 = arith.cmpi sge, %4, %5 : vector<8x128xi32>
    %c96_i32 = arith.constant 96 : i32
    %7 = vector.broadcast %c96_i32 : i32 to vector<8x128xi32>
    %8 = arith.cmpi slt, %4, %7 : vector<8x128xi32>
    %9 = arith.andi %6, %8 : vector<8x128xi1>
    %cst = arith.constant 2.000000e+00 : f32
    %cst_3 = arith.constant 1.000000e+00 : f32
    %10 = vector.broadcast %cst : f32 to vector<8x128xf32>
    %11 = vector.broadcast %cst_3 : f32 to vector<8x128xf32>
    %12 = arith.select %9, %10, %11 : vector<8x128xi1>, vector<8x128xf32>
    %cst_4 = arith.constant -1.000000e+00 : f32
    %cst_5 = arith.constant 0.000000e+00 : f32
    %13 = vector.broadcast %cst_4 : f32 to vector<8x128xf32>
    %14 = vector.broadcast %cst_5 : f32 to vector<8x128xf32>
    %15 = arith.select %9, %13, %14 : vector<8x128xi1>, vector<8x128xf32>
    %c0_6 = arith.constant 0 : index
    %c0_7 = arith.constant 0 : index
    %16 = vector.load %arg4[%c0_6, %c0_7] : memref<8x32xf32, #tpu.memory_space<vmem>>, vector<8x32xf32>
    %c0_8 = arith.constant 0 : index
    %c0_9 = arith.constant 0 : index
    %17 = vector.load %arg5[%c0_8, %c0_9] : memref<8x32xf32, #tpu.memory_space<vmem>>, vector<8x32xf32>
    %cst_10 = arith.constant 0.000000e+00 : f32
    %18 = vector.broadcast %cst_10 : f32 to vector<8x32xf32>
    %c0_i32 = arith.constant 0 : i32
    %19 = arith.index_cast %c0_i32 : i32 to index
    %c0_11 = arith.constant 0 : index
    %c0_12 = arith.constant 0 : index
    %20 = vector.load %arg0[%19, %c0_11, %c0_12] : memref<8x8x128xf32, #tpu.memory_space<vmem>>, vector<1x8x128xf32>
    %21 = vector.shape_cast %20 : vector<1x8x128xf32> to vector<8x128xf32>
    %cst_13 = arith.constant dense<0.000000e+00> : vector<8x128xf32>
    %22 = tpu.matmul %16, %0, %cst_13 {dimension_numbers = #tpu.dot_dimension_numbers<[1], [0], [0], [1], [0, 0, 1, 1], [], []>} : vector<8x32xf32>, vector<32x128xf32>, vector<8x128xf32> -> vector<8x128xf32>
    %23 = arith.addf %21, %22 : vector<8x128xf32>
    %24 = arith.negf %23 : vector<8x128xf32>
    %25 = math.exp %24 : vector<8x128xf32>
    %cst_14 = arith.constant 1.000000e+00 : f32
    %26 = vector.broadcast %cst_14 : f32 to vector<8x128xf32>
    %27 = arith.addf %26, %25 : vector<8x128xf32>
    %28 = arith.divf %26, %27 : vector<8x128xf32>
    %29 = arith.mulf %28, %12 : vector<8x128xf32>
    %30 = arith.addf %29, %15 : vector<8x128xf32>
    %31 = vector.extract_strided_slice %30 {offsets = [0, 0], sizes = [8, 32], strides = [1, 1]} : vector<8x128xf32> to vector<8x32xf32>
    %32 = vector.extract_strided_slice %30 {offsets = [0, 32], sizes = [8, 32], strides = [1, 1]} : vector<8x128xf32> to vector<8x32xf32>
    %33 = vector.extract_strided_slice %30 {offsets = [0, 64], sizes = [8, 32], strides = [1, 1]} : vector<8x128xf32> to vector<8x32xf32>
    %34 = vector.extract_strided_slice %30 {offsets = [0, 96], sizes = [8, 32], strides = [1, 1]} : vector<8x128xf32> to vector<8x32xf32>
    %35 = arith.mulf %32, %17 : vector<8x32xf32>
    %36 = arith.mulf %31, %33 : vector<8x32xf32>
    %37 = arith.addf %35, %36 : vector<8x32xf32>
    %38 = math.tanh %37 : vector<8x32xf32>
    %39 = arith.mulf %34, %38 : vector<8x32xf32>
    %40 = vector.broadcast %c0_i32 : i32 to vector<8x32xi32>
    %41 = arith.cmpi slt, %40, %3 : vector<8x32xi32>
    %42 = arith.extui %41 : vector<8x32xi1> to vector<8x32xi32>
    %43 = arith.sitofp %42 : vector<8x32xi32> to vector<8x32xf32>
    %44 = arith.mulf %43, %39 : vector<8x32xf32>
    %45 = arith.addf %18, %44 : vector<8x32xf32>
    %c1_i32 = arith.constant 1 : i32
    %46 = arith.index_cast %c1_i32 : i32 to index
    %c0_15 = arith.constant 0 : index
    %c0_16 = arith.constant 0 : index
    %47 = vector.load %arg0[%46, %c0_15, %c0_16] : memref<8x8x128xf32, #tpu.memory_space<vmem>>, vector<1x8x128xf32>
    %48 = vector.shape_cast %47 : vector<1x8x128xf32> to vector<8x128xf32>
    %cst_17 = arith.constant dense<0.000000e+00> : vector<8x128xf32>
    %49 = tpu.matmul %39, %0, %cst_17 {dimension_numbers = #tpu.dot_dimension_numbers<[1], [0], [0], [1], [0, 0, 1, 1], [], []>} : vector<8x32xf32>, vector<32x128xf32>, vector<8x128xf32> -> vector<8x128xf32>
    %50 = arith.addf %48, %49 : vector<8x128xf32>
    %51 = arith.negf %50 : vector<8x128xf32>
    %52 = math.exp %51 : vector<8x128xf32>
    %cst_18 = arith.constant 1.000000e+00 : f32
    %53 = vector.broadcast %cst_18 : f32 to vector<8x128xf32>
    %54 = arith.addf %53, %52 : vector<8x128xf32>
    %55 = arith.divf %53, %54 : vector<8x128xf32>
    %56 = arith.mulf %55, %12 : vector<8x128xf32>
    %57 = arith.addf %56, %15 : vector<8x128xf32>
    %58 = vector.extract_strided_slice %57 {offsets = [0, 0], sizes = [8, 32], strides = [1, 1]} : vector<8x128xf32> to vector<8x32xf32>
    %59 = vector.extract_strided_slice %57 {offsets = [0, 32], sizes = [8, 32], strides = [1, 1]} : vector<8x128xf32> to vector<8x32xf32>
    %60 = vector.extract_strided_slice %57 {offsets = [0, 64], sizes = [8, 32], strides = [1, 1]} : vector<8x128xf32> to vector<8x32xf32>
    %61 = vector.extract_strided_slice %57 {offsets = [0, 96], sizes = [8, 32], strides = [1, 1]} : vector<8x128xf32> to vector<8x32xf32>
    %62 = arith.mulf %59, %37 : vector<8x32xf32>
    %63 = arith.mulf %58, %60 : vector<8x32xf32>
    %64 = arith.addf %62, %63 : vector<8x32xf32>
    %65 = math.tanh %64 : vector<8x32xf32>
    %66 = arith.mulf %61, %65 : vector<8x32xf32>
    %67 = vector.broadcast %c1_i32 : i32 to vector<8x32xi32>
    %68 = arith.cmpi slt, %67, %3 : vector<8x32xi32>
    %69 = arith.extui %68 : vector<8x32xi1> to vector<8x32xi32>
    %70 = arith.sitofp %69 : vector<8x32xi32> to vector<8x32xf32>
    %71 = arith.mulf %70, %66 : vector<8x32xf32>
    %72 = arith.addf %45, %71 : vector<8x32xf32>
    %c2_i32 = arith.constant 2 : i32
    %73 = arith.index_cast %c2_i32 : i32 to index
    %c0_19 = arith.constant 0 : index
    %c0_20 = arith.constant 0 : index
    %74 = vector.load %arg0[%73, %c0_19, %c0_20] : memref<8x8x128xf32, #tpu.memory_space<vmem>>, vector<1x8x128xf32>
    %75 = vector.shape_cast %74 : vector<1x8x128xf32> to vector<8x128xf32>
    %cst_21 = arith.constant dense<0.000000e+00> : vector<8x128xf32>
    %76 = tpu.matmul %66, %0, %cst_21 {dimension_numbers = #tpu.dot_dimension_numbers<[1], [0], [0], [1], [0, 0, 1, 1], [], []>} : vector<8x32xf32>, vector<32x128xf32>, vector<8x128xf32> -> vector<8x128xf32>
    %77 = arith.addf %75, %76 : vector<8x128xf32>
    %78 = arith.negf %77 : vector<8x128xf32>
    %79 = math.exp %78 : vector<8x128xf32>
    %cst_22 = arith.constant 1.000000e+00 : f32
    %80 = vector.broadcast %cst_22 : f32 to vector<8x128xf32>
    %81 = arith.addf %80, %79 : vector<8x128xf32>
    %82 = arith.divf %80, %81 : vector<8x128xf32>
    %83 = arith.mulf %82, %12 : vector<8x128xf32>
    %84 = arith.addf %83, %15 : vector<8x128xf32>
    %85 = vector.extract_strided_slice %84 {offsets = [0, 0], sizes = [8, 32], strides = [1, 1]} : vector<8x128xf32> to vector<8x32xf32>
    %86 = vector.extract_strided_slice %84 {offsets = [0, 32], sizes = [8, 32], strides = [1, 1]} : vector<8x128xf32> to vector<8x32xf32>
    %87 = vector.extract_strided_slice %84 {offsets = [0, 64], sizes = [8, 32], strides = [1, 1]} : vector<8x128xf32> to vector<8x32xf32>
    %88 = vector.extract_strided_slice %84 {offsets = [0, 96], sizes = [8, 32], strides = [1, 1]} : vector<8x128xf32> to vector<8x32xf32>
    %89 = arith.mulf %86, %64 : vector<8x32xf32>
    %90 = arith.mulf %85, %87 : vector<8x32xf32>
    %91 = arith.addf %89, %90 : vector<8x32xf32>
    %92 = math.tanh %91 : vector<8x32xf32>
    %93 = arith.mulf %88, %92 : vector<8x32xf32>
    %94 = vector.broadcast %c2_i32 : i32 to vector<8x32xi32>
    %95 = arith.cmpi slt, %94, %3 : vector<8x32xi32>
    %96 = arith.extui %95 : vector<8x32xi1> to vector<8x32xi32>
    %97 = arith.sitofp %96 : vector<8x32xi32> to vector<8x32xf32>
    %98 = arith.mulf %97, %93 : vector<8x32xf32>
    %99 = arith.addf %72, %98 : vector<8x32xf32>
    %c3_i32 = arith.constant 3 : i32
    %100 = arith.index_cast %c3_i32 : i32 to index
    %c0_23 = arith.constant 0 : index
    %c0_24 = arith.constant 0 : index
    %101 = vector.load %arg0[%100, %c0_23, %c0_24] : memref<8x8x128xf32, #tpu.memory_space<vmem>>, vector<1x8x128xf32>
    %102 = vector.shape_cast %101 : vector<1x8x128xf32> to vector<8x128xf32>
    %cst_25 = arith.constant dense<0.000000e+00> : vector<8x128xf32>
    %103 = tpu.matmul %93, %0, %cst_25 {dimension_numbers = #tpu.dot_dimension_numbers<[1], [0], [0], [1], [0, 0, 1, 1], [], []>} : vector<8x32xf32>, vector<32x128xf32>, vector<8x128xf32> -> vector<8x128xf32>
    %104 = arith.addf %102, %103 : vector<8x128xf32>
    %105 = arith.negf %104 : vector<8x128xf32>
    %106 = math.exp %105 : vector<8x128xf32>
    %cst_26 = arith.constant 1.000000e+00 : f32
    %107 = vector.broadcast %cst_26 : f32 to vector<8x128xf32>
    %108 = arith.addf %107, %106 : vector<8x128xf32>
    %109 = arith.divf %107, %108 : vector<8x128xf32>
    %110 = arith.mulf %109, %12 : vector<8x128xf32>
    %111 = arith.addf %110, %15 : vector<8x128xf32>
    %112 = vector.extract_strided_slice %111 {offsets = [0, 0], sizes = [8, 32], strides = [1, 1]} : vector<8x128xf32> to vector<8x32xf32>
    %113 = vector.extract_strided_slice %111 {offsets = [0, 32], sizes = [8, 32], strides = [1, 1]} : vector<8x128xf32> to vector<8x32xf32>
    %114 = vector.extract_strided_slice %111 {offsets = [0, 64], sizes = [8, 32], strides = [1, 1]} : vector<8x128xf32> to vector<8x32xf32>
    %115 = vector.extract_strided_slice %111 {offsets = [0, 96], sizes = [8, 32], strides = [1, 1]} : vector<8x128xf32> to vector<8x32xf32>
    %116 = arith.mulf %113, %91 : vector<8x32xf32>
    %117 = arith.mulf %112, %114 : vector<8x32xf32>
    %118 = arith.addf %116, %117 : vector<8x32xf32>
    %119 = math.tanh %118 : vector<8x32xf32>
    %120 = arith.mulf %115, %119 : vector<8x32xf32>
    %121 = vector.broadcast %c3_i32 : i32 to vector<8x32xi32>
    %122 = arith.cmpi slt, %121, %3 : vector<8x32xi32>
    %123 = arith.extui %122 : vector<8x32xi1> to vector<8x32xi32>
    %124 = arith.sitofp %123 : vector<8x32xi32> to vector<8x32xf32>
    %125 = arith.mulf %124, %120 : vector<8x32xf32>
    %126 = arith.addf %99, %125 : vector<8x32xf32>
    %c4_i32 = arith.constant 4 : i32
    %127 = arith.index_cast %c4_i32 : i32 to index
    %c0_27 = arith.constant 0 : index
    %c0_28 = arith.constant 0 : index
    %128 = vector.load %arg0[%127, %c0_27, %c0_28] : memref<8x8x128xf32, #tpu.memory_space<vmem>>, vector<1x8x128xf32>
    %129 = vector.shape_cast %128 : vector<1x8x128xf32> to vector<8x128xf32>
    %cst_29 = arith.constant dense<0.000000e+00> : vector<8x128xf32>
    %130 = tpu.matmul %120, %0, %cst_29 {dimension_numbers = #tpu.dot_dimension_numbers<[1], [0], [0], [1], [0, 0, 1, 1], [], []>} : vector<8x32xf32>, vector<32x128xf32>, vector<8x128xf32> -> vector<8x128xf32>
    %131 = arith.addf %129, %130 : vector<8x128xf32>
    %132 = arith.negf %131 : vector<8x128xf32>
    %133 = math.exp %132 : vector<8x128xf32>
    %cst_30 = arith.constant 1.000000e+00 : f32
    %134 = vector.broadcast %cst_30 : f32 to vector<8x128xf32>
    %135 = arith.addf %134, %133 : vector<8x128xf32>
    %136 = arith.divf %134, %135 : vector<8x128xf32>
    %137 = arith.mulf %136, %12 : vector<8x128xf32>
    %138 = arith.addf %137, %15 : vector<8x128xf32>
    %139 = vector.extract_strided_slice %138 {offsets = [0, 0], sizes = [8, 32], strides = [1, 1]} : vector<8x128xf32> to vector<8x32xf32>
    %140 = vector.extract_strided_slice %138 {offsets = [0, 32], sizes = [8, 32], strides = [1, 1]} : vector<8x128xf32> to vector<8x32xf32>
    %141 = vector.extract_strided_slice %138 {offsets = [0, 64], sizes = [8, 32], strides = [1, 1]} : vector<8x128xf32> to vector<8x32xf32>
    %142 = vector.extract_strided_slice %138 {offsets = [0, 96], sizes = [8, 32], strides = [1, 1]} : vector<8x128xf32> to vector<8x32xf32>
    %143 = arith.mulf %140, %118 : vector<8x32xf32>
    %144 = arith.mulf %139, %141 : vector<8x32xf32>
    %145 = arith.addf %143, %144 : vector<8x32xf32>
    %146 = math.tanh %145 : vector<8x32xf32>
    %147 = arith.mulf %142, %146 : vector<8x32xf32>
    %148 = vector.broadcast %c4_i32 : i32 to vector<8x32xi32>
    %149 = arith.cmpi slt, %148, %3 : vector<8x32xi32>
    %150 = arith.extui %149 : vector<8x32xi1> to vector<8x32xi32>
    %151 = arith.sitofp %150 : vector<8x32xi32> to vector<8x32xf32>
    %152 = arith.mulf %151, %147 : vector<8x32xf32>
    %153 = arith.addf %126, %152 : vector<8x32xf32>
    %c5_i32 = arith.constant 5 : i32
    %154 = arith.index_cast %c5_i32 : i32 to index
    %c0_31 = arith.constant 0 : index
    %c0_32 = arith.constant 0 : index
    %155 = vector.load %arg0[%154, %c0_31, %c0_32] : memref<8x8x128xf32, #tpu.memory_space<vmem>>, vector<1x8x128xf32>
    %156 = vector.shape_cast %155 : vector<1x8x128xf32> to vector<8x128xf32>
    %cst_33 = arith.constant dense<0.000000e+00> : vector<8x128xf32>
    %157 = tpu.matmul %147, %0, %cst_33 {dimension_numbers = #tpu.dot_dimension_numbers<[1], [0], [0], [1], [0, 0, 1, 1], [], []>} : vector<8x32xf32>, vector<32x128xf32>, vector<8x128xf32> -> vector<8x128xf32>
    %158 = arith.addf %156, %157 : vector<8x128xf32>
    %159 = arith.negf %158 : vector<8x128xf32>
    %160 = math.exp %159 : vector<8x128xf32>
    %cst_34 = arith.constant 1.000000e+00 : f32
    %161 = vector.broadcast %cst_34 : f32 to vector<8x128xf32>
    %162 = arith.addf %161, %160 : vector<8x128xf32>
    %163 = arith.divf %161, %162 : vector<8x128xf32>
    %164 = arith.mulf %163, %12 : vector<8x128xf32>
    %165 = arith.addf %164, %15 : vector<8x128xf32>
    %166 = vector.extract_strided_slice %165 {offsets = [0, 0], sizes = [8, 32], strides = [1, 1]} : vector<8x128xf32> to vector<8x32xf32>
    %167 = vector.extract_strided_slice %165 {offsets = [0, 32], sizes = [8, 32], strides = [1, 1]} : vector<8x128xf32> to vector<8x32xf32>
    %168 = vector.extract_strided_slice %165 {offsets = [0, 64], sizes = [8, 32], strides = [1, 1]} : vector<8x128xf32> to vector<8x32xf32>
    %169 = vector.extract_strided_slice %165 {offsets = [0, 96], sizes = [8, 32], strides = [1, 1]} : vector<8x128xf32> to vector<8x32xf32>
    %170 = arith.mulf %167, %145 : vector<8x32xf32>
    %171 = arith.mulf %166, %168 : vector<8x32xf32>
    %172 = arith.addf %170, %171 : vector<8x32xf32>
    %173 = math.tanh %172 : vector<8x32xf32>
    %174 = arith.mulf %169, %173 : vector<8x32xf32>
    %175 = vector.broadcast %c5_i32 : i32 to vector<8x32xi32>
    %176 = arith.cmpi slt, %175, %3 : vector<8x32xi32>
    %177 = arith.extui %176 : vector<8x32xi1> to vector<8x32xi32>
    %178 = arith.sitofp %177 : vector<8x32xi32> to vector<8x32xf32>
    %179 = arith.mulf %178, %174 : vector<8x32xf32>
    %180 = arith.addf %153, %179 : vector<8x32xf32>
    %c6_i32 = arith.constant 6 : i32
    %181 = arith.index_cast %c6_i32 : i32 to index
    %c0_35 = arith.constant 0 : index
    %c0_36 = arith.constant 0 : index
    %182 = vector.load %arg0[%181, %c0_35, %c0_36] : memref<8x8x128xf32, #tpu.memory_space<vmem>>, vector<1x8x128xf32>
    %183 = vector.shape_cast %182 : vector<1x8x128xf32> to vector<8x128xf32>
    %cst_37 = arith.constant dense<0.000000e+00> : vector<8x128xf32>
    %184 = tpu.matmul %174, %0, %cst_37 {dimension_numbers = #tpu.dot_dimension_numbers<[1], [0], [0], [1], [0, 0, 1, 1], [], []>} : vector<8x32xf32>, vector<32x128xf32>, vector<8x128xf32> -> vector<8x128xf32>
    %185 = arith.addf %183, %184 : vector<8x128xf32>
    %186 = arith.negf %185 : vector<8x128xf32>
    %187 = math.exp %186 : vector<8x128xf32>
    %cst_38 = arith.constant 1.000000e+00 : f32
    %188 = vector.broadcast %cst_38 : f32 to vector<8x128xf32>
    %189 = arith.addf %188, %187 : vector<8x128xf32>
    %190 = arith.divf %188, %189 : vector<8x128xf32>
    %191 = arith.mulf %190, %12 : vector<8x128xf32>
    %192 = arith.addf %191, %15 : vector<8x128xf32>
    %193 = vector.extract_strided_slice %192 {offsets = [0, 0], sizes = [8, 32], strides = [1, 1]} : vector<8x128xf32> to vector<8x32xf32>
    %194 = vector.extract_strided_slice %192 {offsets = [0, 32], sizes = [8, 32], strides = [1, 1]} : vector<8x128xf32> to vector<8x32xf32>
    %195 = vector.extract_strided_slice %192 {offsets = [0, 64], sizes = [8, 32], strides = [1, 1]} : vector<8x128xf32> to vector<8x32xf32>
    %196 = vector.extract_strided_slice %192 {offsets = [0, 96], sizes = [8, 32], strides = [1, 1]} : vector<8x128xf32> to vector<8x32xf32>
    %197 = arith.mulf %194, %172 : vector<8x32xf32>
    %198 = arith.mulf %193, %195 : vector<8x32xf32>
    %199 = arith.addf %197, %198 : vector<8x32xf32>
    %200 = math.tanh %199 : vector<8x32xf32>
    %201 = arith.mulf %196, %200 : vector<8x32xf32>
    %202 = vector.broadcast %c6_i32 : i32 to vector<8x32xi32>
    %203 = arith.cmpi slt, %202, %3 : vector<8x32xi32>
    %204 = arith.extui %203 : vector<8x32xi1> to vector<8x32xi32>
    %205 = arith.sitofp %204 : vector<8x32xi32> to vector<8x32xf32>
    %206 = arith.mulf %205, %201 : vector<8x32xf32>
    %207 = arith.addf %180, %206 : vector<8x32xf32>
    %c7_i32 = arith.constant 7 : i32
    %208 = arith.index_cast %c7_i32 : i32 to index
    %c0_39 = arith.constant 0 : index
    %c0_40 = arith.constant 0 : index
    %209 = vector.load %arg0[%208, %c0_39, %c0_40] : memref<8x8x128xf32, #tpu.memory_space<vmem>>, vector<1x8x128xf32>
    %210 = vector.shape_cast %209 : vector<1x8x128xf32> to vector<8x128xf32>
    %cst_41 = arith.constant dense<0.000000e+00> : vector<8x128xf32>
    %211 = tpu.matmul %201, %0, %cst_41 {dimension_numbers = #tpu.dot_dimension_numbers<[1], [0], [0], [1], [0, 0, 1, 1], [], []>} : vector<8x32xf32>, vector<32x128xf32>, vector<8x128xf32> -> vector<8x128xf32>
    %212 = arith.addf %210, %211 : vector<8x128xf32>
    %213 = arith.negf %212 : vector<8x128xf32>
    %214 = math.exp %213 : vector<8x128xf32>
    %cst_42 = arith.constant 1.000000e+00 : f32
    %215 = vector.broadcast %cst_42 : f32 to vector<8x128xf32>
    %216 = arith.addf %215, %214 : vector<8x128xf32>
    %217 = arith.divf %215, %216 : vector<8x128xf32>
    %218 = arith.mulf %217, %12 : vector<8x128xf32>
    %219 = arith.addf %218, %15 : vector<8x128xf32>
    %220 = vector.extract_strided_slice %219 {offsets = [0, 0], sizes = [8, 32], strides = [1, 1]} : vector<8x128xf32> to vector<8x32xf32>
    %221 = vector.extract_strided_slice %219 {offsets = [0, 32], sizes = [8, 32], strides = [1, 1]} : vector<8x128xf32> to vector<8x32xf32>
    %222 = vector.extract_strided_slice %219 {offsets = [0, 64], sizes = [8, 32], strides = [1, 1]} : vector<8x128xf32> to vector<8x32xf32>
    %223 = vector.extract_strided_slice %219 {offsets = [0, 96], sizes = [8, 32], strides = [1, 1]} : vector<8x128xf32> to vector<8x32xf32>
    %224 = arith.mulf %221, %199 : vector<8x32xf32>
    %225 = arith.mulf %220, %222 : vector<8x32xf32>
    %226 = arith.addf %224, %225 : vector<8x32xf32>
    %227 = math.tanh %226 : vector<8x32xf32>
    %228 = arith.mulf %223, %227 : vector<8x32xf32>
    %229 = vector.broadcast %c7_i32 : i32 to vector<8x32xi32>
    %230 = arith.cmpi slt, %229, %3 : vector<8x32xi32>
    %231 = arith.extui %230 : vector<8x32xi1> to vector<8x32xi32>
    %232 = arith.sitofp %231 : vector<8x32xi32> to vector<8x32xf32>
    %233 = arith.mulf %232, %228 : vector<8x32xf32>
    %234 = arith.addf %207, %233 : vector<8x32xf32>
    %c8_i32 = arith.constant 8 : i32
    %c0_43 = arith.constant 0 : index
    %c0_44 = arith.constant 0 : index
    %235 = vector.load %arg2[%c0_43, %c0_44] : memref<8x1xf32, #tpu.memory_space<vmem>>, vector<8x1xf32>
    %236 = vector.broadcast %235 : vector<8x1xf32> to vector<8x32xf32>
    %237 = arith.mulf %234, %236 : vector<8x32xf32>
    %238 = vector.extract_strided_slice %237 {offsets = [0, 0], sizes = [2, 32], strides = [1, 1]} : vector<8x32xf32> to vector<2x32xf32>
    %239 = vector.extract_strided_slice %237 {offsets = [2, 0], sizes = [2, 32], strides = [1, 1]} : vector<8x32xf32> to vector<2x32xf32>
    %240 = arith.addf %238, %239 : vector<2x32xf32>
    %c0_45 = arith.constant 0 : index
    %c0_46 = arith.constant 0 : index
    %241 = vector.load %arg6[%c0_45, %c0_46] : memref<32x2xf32, #tpu.memory_space<vmem>>, vector<32x2xf32>
    %cst_47 = arith.constant dense<0.000000e+00> : vector<2x2xf32>
    %242 = tpu.matmul %240, %241, %cst_47 {dimension_numbers = #tpu.dot_dimension_numbers<[1], [0], [0], [1], [0, 0, 1, 1], [], []>} : vector<2x32xf32>, vector<32x2xf32>, vector<2x2xf32> -> vector<2x2xf32>
    %c0_48 = arith.constant 0 : index
    %c0_49 = arith.constant 0 : index
    %243 = vector.load %arg7[%c0_48, %c0_49] : memref<1x2xf32, #tpu.memory_space<vmem>>, vector<1x2xf32>
    %244 = vector.broadcast %243 : vector<1x2xf32> to vector<2x2xf32>
    %245 = arith.addf %242, %244 : vector<2x2xf32>
    %c0_50 = arith.constant 0 : index
    %c0_51 = arith.constant 0 : index
    %246 = vector.load %arg8[%c0_50, %c0_51] : memref<2x2xf32, #tpu.memory_space<vmem>>, vector<2x2xf32>
    tpu.vector_store %arg8[%c0_50, %c0_51], %245 {strides = array<i32>} : memref<2x2xf32, #tpu.memory_space<vmem>>, vector<2x2xf32>,
    return
  }
}

</mosaic_0001>

<llo_original>
// kernel: ppinet_forward.1
$region0: #{ppinet_forward.1}
  #allocation0 [shape = 'u32[]', space=smem, size = 0x4, offset = 0x4, fixed_abs, tag = 'smem constant byte address 0x4 - core index']
  #allocation1 [shape = 'u32[144,128]{1,0:T(1,128)}', space=vmem, size = 0x12000, scoped, tag = 'internal scratch']
  %s0 = inlined_call_operand.vmem [shape: f32[8,8,128], index: 0, kind: input, shape index: {}]
  %s1 = inlined_call_operand.vmem [shape: s32[8,1], index: 1, kind: input, shape index: {}]
  %s2 = inlined_call_operand.vmem [shape: f32[8,1], index: 2, kind: input, shape index: {}]
  %s3 = inlined_call_operand.vmem [shape: f32[32,128], index: 3, kind: input, shape index: {}]
  %s4 = inlined_call_operand.vmem [shape: f32[8,32], index: 4, kind: input, shape index: {}]
  %s5 = inlined_call_operand.vmem [shape: f32[8,32], index: 5, kind: input, shape index: {}]
  %s6 = inlined_call_operand.vmem [shape: f32[32,2], index: 6, kind: input, shape index: {}]
  %s7 = inlined_call_operand.vmem [shape: f32[1,2], index: 7, kind: input, shape index: {}]
  %s8 = inlined_call_operand.hbm [shape: f32[2,2], index: 8, kind: output, shape index: {}]
  %s9 = sld [smem:[#allocation0]]
  $region42: #{ppinet_forward.1} parent=0
    _
  %s11 = ssub.s32 1, %s9
  %s12 = scalar_select 0, %s11, %s9
  $region1: #{ppinet_forward.1} parent=0
    #allocation2 [shape = 'u8[1024]{0}', space=vmem, size = 0x400, scoped, tag = 'output window, operand 0, single buffered']
    #allocation3 [shape = 's32[1]{0}', space=sflag, size = 0x4, scoped, tag = 'scoped memory for ppinet_forward.1']
    %13 = vsyncpa [#allocation3], 0
    // Predicated region
    $region2: #{ppinet_forward.1} parent=1 // pred_check
      _
    $region3: #{ppinet_forward.1} parent=1 // pred_check_branch
      %15 = sbr.rel (0) target = $region5
    $region4: #{ppinet_forward.1} parent=1 // pred_region
      _
    $region5: #{ppinet_forward.1} parent=1 // pred_fallthru
      _
    // Predicated region
    $region6: #{ppinet_forward.1} parent=1 // pred_check
      _
    $region7: #{ppinet_forward.1} parent=1 // pred_check_branch
      %17 = sbr.rel (0) target = $region9
    $region8: #{ppinet_forward.1} parent=1 // pred_region
      _
    $region9: #{ppinet_forward.1} parent=1 // pred_fallthru
      _
    // Predicated region
    $region10: #{ppinet_forward.1} parent=1 // pred_check
      _
    $region11: #{ppinet_forward.1} parent=1 // pred_check_branch
      %19 = sbr.rel (0) target = $region13
    $region12: #{ppinet_forward.1} parent=1 // pred_region
      _
    $region13: #{ppinet_forward.1} parent=1 // pred_fallthru
      _
    // Predicated region
    $region14: #{ppinet_forward.1} parent=1 // pred_check
      _
    $region15: #{ppinet_forward.1} parent=1 // pred_check_branch
      %21 = sbr.rel (0) target = $region17
    $region16: #{ppinet_forward.1} parent=1 // pred_region
      _
    $region17: #{ppinet_forward.1} parent=1 // pred_fallthru
      _
    // Predicated region
    $region18: #{ppinet_forward.1} parent=1 // pred_check
      _
    $region19: #{ppinet_forward.1} parent=1 // pred_check_branch
      %23 = sbr.rel (0) target = $region21
    $region20: #{ppinet_forward.1} parent=1 // pred_region
      _
    $region21: #{ppinet_forward.1} parent=1 // pred_fallthru
      _
    // Predicated region
    $region22: #{ppinet_forward.1} parent=1 // pred_check
      _
    $region23: #{ppinet_forward.1} parent=1 // pred_check_branch
      %25 = sbr.rel (0) target = $region25
    $region24: #{ppinet_forward.1} parent=1 // pred_region
      _
    $region25: #{ppinet_forward.1} parent=1 // pred_fallthru
      _
    // Predicated region
    $region26: #{ppinet_forward.1} parent=1 // pred_check
      _
    $region27: #{ppinet_forward.1} parent=1 // pred_check_branch
      %27 = sbr.rel (0) target = $region29
    $region28: #{ppinet_forward.1} parent=1 // pred_region
      _
    $region29: #{ppinet_forward.1} parent=1 // pred_fallthru
      _
    // Predicated region
    $region30: #{ppinet_forward.1} parent=1 // pred_check
      _
    $region31: #{ppinet_forward.1} parent=1 // pred_check_branch
      %29 = sbr.rel (0) target = $region33
    $region32: #{ppinet_forward.1} parent=1 // pred_region
      _
    $region33: #{ppinet_forward.1} parent=1 // pred_fallthru
      _
    %v30 = vld [vmem:[%s3] sm:$0xff]
    %v31 = vld [vmem:[%s3 + $0x8] sm:$0xff]
    %v32 = vld [vmem:[%s3 + $0x10] sm:$0xff]
    %v33 = vld [vmem:[%s3 + $0x18] sm:$0xff]
    %v34 = vld [vmem:[%s1] sm:$0xff]
    %35 = vset.pattern.permute.xlu0 0
    %36 = vperm.xlu0 %35, %v34
    %v37 = vpop.permute.xlu0 %36
    %v38 = vlaneseq
    %v39 = vand.u32 %v38, 127
    %vm40 = vcmp.ge.s32.totalorder %v39, 64
    %vm41 = vcmp.lt.s32.totalorder %v39, 96
    %vm42 = vmand %vm40, %vm41
    %v43 = vsel %vm42, 2.0, 1.0
    %v44 = vsel %vm42, -1.0, 0.0
    %v45 = vld [vmem:[%s4] sm:$0xff]
    %v46 = vld [vmem:[%s5] sm:$0xff]
    %v47 = vld [vmem:[%s0] sm:$0xff]
    %vm48 = vcmask 261120
    %v50 = vsel %vm48, %v45, 0
    %52 = vmatprep.subr.mxu0 0.0
    %53 = vmatpush1.msra.mxu0 %v30
    %54 = vmatprep.subr.mxu0 0.0
    %55 = vmatpush1.msra.mxu0 %v31
    %56 = vmatprep.subr.mxu0 0.0
    %57 = vmatpush1.msra.mxu0 %v32
    %58 = vmatprep.subr.mxu0 0.0
    %59 = vmatpush1.msra.mxu0 %v33
    %60 = vmatprep.subr.mxu0 0.0
    %61 = vmatpush1.msra.mxu0 0.0
    %62 = vmatprep.subr.mxu0 0.0
    %63 = vmatpush1.msra.mxu0 0.0
    %64 = vmatprep.subr.mxu0 0.0
    %65 = vmatpush1.msra.mxu0 0.0
    %66 = vmatprep.subr.mxu0 0.0
    %67 = vmatpush1.msra.mxu0 0.0
    %68 = vmatprep.subr.mxu0 0.0
    %69 = vmatpush1.msra.mxu0 0.0
    %70 = vmatprep.subr.mxu0 0.0
    %71 = vmatpush1.msra.mxu0 0.0
    %72 = vmatprep.subr.mxu0 0.0
    %73 = vmatpush1.msra.mxu0 0.0
    %74 = vmatprep.subr.mxu0 0.0
    %75 = vmatpush1.msra.mxu0 0.0
    %76 = vmatprep.subr.mxu0 0.0
    %77 = vmatpush1.msra.mxu0 0.0
    %78 = vmatprep.subr.mxu0 0.0
    %79 = vmatpush1.msra.mxu0 0.0
    %80 = vmatprep.subr.mxu0 0.0
    %81 = vmatpush1.msra.mxu0 0.0
    %82 = vmatprep.subr.mxu0 0.0
    %83 = vmatpush1.msra.mxu0 0.0
    %84 = vmatprep.subr.mxu0 0.0
    %85 = vmatpush1.msra.mxu0 0.0
    %86 = vmatprep.subr.mxu0 0.0
    %87 = vmatpush1.msra.mxu0 0.0
    %88 = vmatprep.subr.mxu0 0.0
    %89 = vmatpush1.msra.mxu0 0.0
    %90 = vmatprep.subr.mxu0 0.0
    %91 = vmatpush1.msra.mxu0 0.0
    %92 = vmatprep.subr.mxu0 0.0
    %93 = vmatpush1.msra.mxu0 0.0
    %94 = vmatprep.subr.mxu0 0.0
    %95 = vmatpush1.msra.mxu0 0.0
    %96 = vmatprep.subr.mxu0 0.0
    %97 = vmatpush1.msra.mxu0 0.0
    %98 = vmatprep.subr.mxu0 0.0
    %99 = vmatpush1.msra.mxu0 0.0
    %100 = vmatprep.subr.mxu0 0.0
    %101 = vmatpush1.msra.mxu0 0.0
    %102 = vmatprep.subr.mxu0 0.0
    %103 = vmatpush1.msra.mxu0 0.0
    %104 = vmatprep.subr.mxu0 0.0
    %105 = vmatpush1.msra.mxu0 0.0
    %106 = vmatprep.subr.mxu0 0.0
    %107 = vmatpush1.msra.mxu0 0.0
    %108 = vmatprep.subr.mxu0 0.0
    %109 = vmatpush1.msra.mxu0 0.0
    %110 = vmatprep.subr.mxu0 0.0
    %111 = vmatpush1.msra.mxu0 0.0
    %112 = vmatprep.subr.mxu0 0.0
    %113 = vmatpush1.msra.mxu0 0.0
    %114 = vmatprep.subr.mxu0 0.0
    %115 = vmatpush1.msra.mxu0 0.0
    %116 = vmatprep.mubr.f32.mxu0 0.0
    %117 = vmatmul.mubr.f32.gmra.mrb[0].mxu0 %v50
    %v118 = vpop.f32.mrb[0].mxu0
    %v119 = vadd.f32 0.0, %v118
    %v120 = vpop.f32.mrb[0].mxu0
    %121 = vdwg.mxu0
    %v122 = vadd.f32 %v47, %v119
    %v123 = vxor.u32 %v122, 2147483648
    %v124 = vmul.f32 %v123, 1.442695
    %v125 = vpow.pop %v124
    %v126 = vadd.f32 %v125, 1.0
    %v127 = vrcp.pop %v126
    %v128 = vmul.f32 1.0, %v127
    %v129 = vmul.f32 %v128, %v43
    %v130 = vadd.f32 %v129, %v44
    %132 = vrot.lane.b32.xlu0 %v46, 32
    %v133 = vpop.permute.xlu0 %132
    %v135 = vmul.f32 %v130, %v133
    %137 = vrot.lane.b32.xlu0 %v130, 64
    %v138 = vpop.permute.xlu0 %137
    %v140 = vmul.f32 %v130, %v138
    %142 = vrot.lane.b32.xlu0 %v140, 32
    %v143 = vpop.permute.xlu0 %142
    %v145 = vadd.f32 %v135, %v143
    %v146 = vtanh.pop %v145
    %148 = vrot.lane.b32.xlu0 %v146, 64
    %v149 = vpop.permute.xlu0 %148
    %v151 = vmul.f32 %v130, %v149
    %vm152 = vcmp.gt.s32.totalorder %v37, 0
    %v153 = vsel %vm152, 1, 0
    %v154 = vcvt.s32.f32 %v153
    %v155 = vmul.f32 %v154, %v151
    %v156 = vadd.f32 %v155, 0.0
    %s157 = scalar_lea.vmem %s0, 8
    %v158 = vld [vmem:[%s157] sm:$0xff]
    %160 = vrot.lane.b32.xlu0 %v151, 32
    %v161 = vpop.permute.xlu0 %160
    %v162 = vsel %vm48, %v161, 0
    %164 = vmatprep.subr.mxu0 0.0
    %165 = vmatpush1.msra.mxu0 %v30
    %166 = vmatprep.subr.mxu0 0.0
    %167 = vmatpush1.msra.mxu0 %v31
    %168 = vmatprep.subr.mxu0 0.0
    %169 = vmatpush1.msra.mxu0 %v32
    %170 = vmatprep.subr.mxu0 0.0
    %171 = vmatpush1.msra.mxu0 %v33
    %172 = vmatprep.subr.mxu0 0.0
    %173 = vmatpush1.msra.mxu0 0.0
    %174 = vmatprep.subr.mxu0 0.0
    %175 = vmatpush1.msra.mxu0 0.0
    %176 = vmatprep.subr.mxu0 0.0
    %177 = vmatpush1.msra.mxu0 0.0
    %178 = vmatprep.subr.mxu0 0.0
    %179 = vmatpush1.msra.mxu0 0.0
    %180 = vmatprep.subr.mxu0 0.0
    %181 = vmatpush1.msra.mxu0 0.0
    %182 = vmatprep.subr.mxu0 0.0
    %183 = vmatpush1.msra.mxu0 0.0
    %184 = vmatprep.subr.mxu0 0.0
    %185 = vmatpush1.msra.mxu0 0.0
    %186 = vmatprep.subr.mxu0 0.0
    %187 = vmatpush1.msra.mxu0 0.0
    %188 = vmatprep.subr.mxu0 0.0
    %189 = vmatpush1.msra.mxu0 0.0
    %190 = vmatprep.subr.mxu0 0.0
    %191 = vmatpush1.msra.mxu0 0.0
    %192 = vmatprep.subr.mxu0 0.0
    %193 = vmatpush1.msra.mxu0 0.0
    %194 = vmatprep.subr.mxu0 0.0
    %195 = vmatpush1.msra.mxu0 0.0
    %196 = vmatprep.subr.mxu0 0.0
    %197 = vmatpush1.msra.mxu0 0.0
    %198 = vmatprep.subr.mxu0 0.0
    %199 = vmatpush1.msra.mxu0 0.0
    %200 = vmatprep.subr.mxu0 0.0
    %201 = vmatpush1.msra.mxu0 0.0
    %202 = vmatprep.subr.mxu0 0.0
    %203 = vmatpush1.msra.mxu0 0.0
    %204 = vmatprep.subr.mxu0 0.0
    %205 = vmatpush1.msra.mxu0 0.0
    %206 = vmatprep.subr.mxu0 0.0
    %207 = vmatpush1.msra.mxu0 0.0
    %208 = vmatprep.subr.mxu0 0.0
    %209 = vmatpush1.msra.mxu0 0.0
    %210 = vmatprep.subr.mxu0 0.0
    %211 = vmatpush1.msra.mxu0 0.0
    %212 = vmatprep.subr.mxu0 0.0
    %213 = vmatpush1.msra.mxu0 0.0
    %214 = vmatprep.subr.mxu0 0.0
    %215 = vmatpush1.msra.mxu0 0.0
    %216 = vmatprep.subr.mxu0 0.0
    %217 = vmatpush1.msra.mxu0 0.0
    %218 = vmatprep.subr.mxu0 0.0
    %219 = vmatpush1.msra.mxu0 0.0
    %220 = vmatprep.subr.mxu0 0.0
    %221 = vmatpush1.msra.mxu0 0.0
    %222 = vmatprep.subr.mxu0 0.0
    %223 = vmatpush1.msra.mxu0 0.0
    %224 = vmatprep.subr.mxu0 0.0
    %225 = vmatpush1.msra.mxu0 0.0
    %226 = vmatprep.subr.mxu0 0.0
    %227 = vmatpush1.msra.mxu0 0.0
    %228 = vmatprep.mubr.f32.mxu0 0.0
    %229 = vmatmul.mubr.f32.gmra.mrb[0].mxu0 %v162
    %v230 = vpop.f32.mrb[0].mxu0
    %v231 = vadd.f32 0.0, %v230
    %v232 = vpop.f32.mrb[0].mxu0
    %233 = vdwg.mxu0
    %v234 = vadd.f32 %v158, %v231
    %v235 = vxor.u32 %v234, 2147483648
    %v236 = vmul.f32 %v235, 1.442695
    %v237 = vpow.pop %v236
    %v238 = vadd.f32 %v237, 1.0
    %v239 = vrcp.pop %v238
    %v240 = vmul.f32 1.0, %v239
    %v241 = vmul.f32 %v240, %v43
    %v242 = vadd.f32 %v241, %v44
    %v243 = vmul.f32 %v242, %v145
    %245 = vrot.lane.b32.xlu0 %v242, 64
    %v246 = vpop.permute.xlu0 %245
    %v248 = vmul.f32 %v242, %v246
    %250 = vrot.lane.b32.xlu0 %v248, 32
    %v251 = vpop.permute.xlu0 %250
    %v253 = vadd.f32 %v243, %v251
    %v254 = vtanh.pop %v253
    %256 = vrot.lane.b32.xlu0 %v254, 64
    %v257 = vpop.permute.xlu0 %256
    %v259 = vmul.f32 %v242, %v257
    %vm260 = vcmp.gt.s32.totalorder %v37, 1
    %v261 = vsel %vm260, 1, 0
    %v262 = vcvt.s32.f32 %v261
    %v263 = vmul.f32 %v262, %v259
    %v264 = vadd.f32 %v156, %v263
    %s265 = scalar_lea.vmem %s0, 16
    %v266 = vld [vmem:[%s265] sm:$0xff]
    %268 = vrot.lane.b32.xlu0 %v259, 32
    %v269 = vpop.permute.xlu0 %268
    %v270 = vsel %vm48, %v269, 0
    %272 = vmatprep.subr.mxu0 0.0
    %273 = vmatpush1.msra.mxu0 %v30
    %274 = vmatprep.subr.mxu0 0.0
    %275 = vmatpush1.msra.mxu0 %v31
    %276 = vmatprep.subr.mxu0 0.0
    %277 = vmatpush1.msra.mxu0 %v32
    %278 = vmatprep.subr.mxu0 0.0
    %279 = vmatpush1.msra.mxu0 %v33
    %280 = vmatprep.subr.mxu0 0.0
    %281 = vmatpush1.msra.mxu0 0.0
    %282 = vmatprep.subr.mxu0 0.0
    %283 = vmatpush1.msra.mxu0 0.0
    %284 = vmatprep.subr.mxu0 0.0
    %285 = vmatpush1.msra.mxu0 0.0
    %286 = vmatprep.subr.mxu0 0.0
    %287 = vmatpush1.msra.mxu0 0.0
    %288 = vmatprep.subr.mxu0 0.0
    %289 = vmatpush1.msra.mxu0 0.0
    %290 = vmatprep.subr.mxu0 0.0
    %291 = vmatpush1.msra.mxu0 0.0
    %292 = vmatprep.subr.mxu0 0.0
    %293 = vmatpush1.msra.mxu0 0.0
    %294 = vmatprep.subr.mxu0 0.0
    %295 = vmatpush1.msra.mxu0 0.0
    %296 = vmatprep.subr.mxu0 0.0
    %297 = vmatpush1.msra.mxu0 0.0
    %298 = vmatprep.subr.mxu0 0.0
    %299 = vmatpush1.msra.mxu0 0.0
    %300 = vmatprep.subr.mxu0 0.0
    %301 = vmatpush1.msra.mxu0 0.0
    %302 = vmatprep.subr.mxu0 0.0
    %303 = vmatpush1.msra.mxu0 0.0
    %304 = vmatprep.subr.mxu0 0.0
    %305 = vmatpush1.msra.mxu0 0.0
    %306 = vmatprep.subr.mxu0 0.0
    %307 = vmatpush1.msra.mxu0 0.0
    %308 = vmatprep.subr.mxu0 0.0
    %309 = vmatpush1.msra.mxu0 0.0
    %310 = vmatprep.subr.mxu0 0.0
    %311 = vmatpush1.msra.mxu0 0.0
    %312 = vmatprep.subr.mxu0 0.0
    %313 = vmatpush1.msra.mxu0 0.0
    %314 = vmatprep.subr.mxu0 0.0
    %315 = vmatpush1.msra.mxu0 0.0
    %316 = vmatprep.subr.mxu0 0.0
    %317 = vmatpush1.msra.mxu0 0.0
    %318 = vmatprep.subr.mxu0 0.0
    %319 = vmatpush1.msra.mxu0 0.0
    %320 = vmatprep.subr.mxu0 0.0
    %321 = vmatpush1.msra.mxu0 0.0
    %322 = vmatprep.subr.mxu0 0.0
    %323 = vmatpush1.msra.mxu0 0.0
    %324 = vmatprep.subr.mxu0 0.0
    %325 = vmatpush1.msra.mxu0 0.0
    %326 = vmatprep.subr.mxu0 0.0
    %327 = vmatpush1.msra.mxu0 0.0
    %328 = vmatprep.subr.mxu0 0.0
    %329 = vmatpush1.msra.mxu0 0.0
    %330 = vmatprep.subr.mxu0 0.0
    %331 = vmatpush1.msra.mxu0 0.0
    %332 = vmatprep.subr.mxu0 0.0
    %333 = vmatpush1.msra.mxu0 0.0
    %334 = vmatprep.subr.mxu0 0.0
    %335 = vmatpush1.msra.mxu0 0.0
    %336 = vmatprep.mubr.f32.mxu0 0.0
    %337 = vmatmul.mubr.f32.gmra.mrb[0].mxu0 %v270
    %v338 = vpop.f32.mrb[0].mxu0
    %v339 = vadd.f32 0.0, %v338
    %v340 = vpop.f32.mrb[0].mxu0
    %341 = vdwg.mxu0
    %v342 = vadd.f32 %v266, %v339
    %v343 = vxor.u32 %v342, 2147483648
    %v344 = vmul.f32 %v343, 1.442695
    %v345 = vpow.pop %v344
    %v346 = vadd.f32 %v345, 1.0
    %v347 = vrcp.pop %v346
    %v348 = vmul.f32 1.0, %v347
    %v349 = vmul.f32 %v348, %v43
    %v350 = vadd.f32 %v349, %v44
    %v351 = vmul.f32 %v350, %v253
    %353 = vrot.lane.b32.xlu0 %v350, 64
    %v354 = vpop.permute.xlu0 %353
    %v356 = vmul.f32 %v350, %v354
    %358 = vrot.lane.b32.xlu0 %v356, 32
    %v359 = vpop.permute.xlu0 %358
    %v361 = vadd.f32 %v351, %v359
    %v362 = vtanh.pop %v361
    %364 = vrot.lane.b32.xlu0 %v362, 64
    %v365 = vpop.permute.xlu0 %364
    %v367 = vmul.f32 %v350, %v365
    %vm368 = vcmp.gt.s32.totalorder %v37, 2
    %v369 = vsel %vm368, 1, 0
    %v370 = vcvt.s32.f32 %v369
    %v371 = vmul.f32 %v370, %v367
    %v372 = vadd.f32 %v264, %v371
    %s373 = scalar_lea.vmem %s0, 24
    %v374 = vld [vmem:[%s373] sm:$0xff]
    %376 = vrot.lane.b32.xlu0 %v367, 32
    %v377 = vpop.permute.xlu0 %376
    %v378 = vsel %vm48, %v377, 0
    %380 = vmatprep.subr.mxu0 0.0
    %381 = vmatpush1.msra.mxu0 %v30
    %382 = vmatprep.subr.mxu0 0.0
    %383 = vmatpush1.msra.mxu0 %v31
    %384 = vmatprep.subr.mxu0 0.0
    %385 = vmatpush1.msra.mxu0 %v32
    %386 = vmatprep.subr.mxu0 0.0
    %387 = vmatpush1.msra.mxu0 %v33
    %388 = vmatprep.subr.mxu0 0.0
    %389 = vmatpush1.msra.mxu0 0.0
    %390 = vmatprep.subr.mxu0 0.0
    %391 = vmatpush1.msra.mxu0 0.0
    %392 = vmatprep.subr.mxu0 0.0
    %393 = vmatpush1.msra.mxu0 0.0
    %394 = vmatprep.subr.mxu0 0.0
    %395 = vmatpush1.msra.mxu0 0.0
    %396 = vmatprep.subr.mxu0 0.0
    %397 = vmatpush1.msra.mxu0 0.0
    %398 = vmatprep.subr.mxu0 0.0
    %399 = vmatpush1.msra.mxu0 0.0
    %400 = vmatprep.subr.mxu0 0.0
    %401 = vmatpush1.msra.mxu0 0.0
    %402 = vmatprep.subr.mxu0 0.0
    %403 = vmatpush1.msra.mxu0 0.0
    %404 = vmatprep.subr.mxu0 0.0
    %405 = vmatpush1.msra.mxu0 0.0
    %406 = vmatprep.subr.mxu0 0.0
    %407 = vmatpush1.msra.mxu0 0.0
    %408 = vmatprep.subr.mxu0 0.0
    %409 = vmatpush1.msra.mxu0 0.0
    %410 = vmatprep.subr.mxu0 0.0
    %411 = vmatpush1.msra.mxu0 0.0
    %412 = vmatprep.subr.mxu0 0.0
    %413 = vmatpush1.msra.mxu0 0.0
    %414 = vmatprep.subr.mxu0 0.0
    %415 = vmatpush1.msra.mxu0 0.0
    %416 = vmatprep.subr.mxu0 0.0
    %417 = vmatpush1.msra.mxu0 0.0
    %418 = vmatprep.subr.mxu0 0.0
    %419 = vmatpush1.msra.mxu0 0.0
    %420 = vmatprep.subr.mxu0 0.0
    %421 = vmatpush1.msra.mxu0 0.0
    %422 = vmatprep.subr.mxu0 0.0
    %423 = vmatpush1.msra.mxu0 0.0
    %424 = vmatprep.subr.mxu0 0.0
    %425 = vmatpush1.msra.mxu0 0.0
    %426 = vmatprep.subr.mxu0 0.0
    %427 = vmatpush1.msra.mxu0 0.0
    %428 = vmatprep.subr.mxu0 0.0
    %429 = vmatpush1.msra.mxu0 0.0
    %430 = vmatprep.subr.mxu0 0.0
    %431 = vmatpush1.msra.mxu0 0.0
    %432 = vmatprep.subr.mxu0 0.0
    %433 = vmatpush1.msra.mxu0 0.0
    %434 = vmatprep.subr.mxu0 0.0
    %435 = vmatpush1.msra.mxu0 0.0
    %436 = vmatprep.subr.mxu0 0.0
    %437 = vmatpush1.msra.mxu0 0.0
    %438 = vmatprep.subr.mxu0 0.0
    %439 = vmatpush1.msra.mxu0 0.0
    %440 = vmatprep.subr.mxu0 0.0
    %441 = vmatpush1.msra.mxu0 0.0
    %442 = vmatprep.subr.mxu0 0.0
    %443 = vmatpush1.msra.mxu0 0.0
    %444 = vmatprep.mubr.f32.mxu0 0.0
    %445 = vmatmul.mubr.f32.gmra.mrb[0].mxu0 %v378
    %v446 = vpop.f32.mrb[0].mxu0
    %v447 = vadd.f32 0.0, %v446
    %v448 = vpop.f32.mrb[0].mxu0
    %449 = vdwg.mxu0
    %v450 = vadd.f32 %v374, %v447
    %v451 = vxor.u32 %v450, 2147483648
    %v452 = vmul.f32 %v451, 1.442695
    %v453 = vpow.pop %v452
    %v454 = vadd.f32 %v453, 1.0
    %v455 = vrcp.pop %v454
    %v456 = vmul.f32 1.0, %v455
    %v457 = vmul.f32 %v456, %v43
    %v458 = vadd.f32 %v457, %v44
    %v459 = vmul.f32 %v458, %v361
    %461 = vrot.lane.b32.xlu0 %v458, 64
    %v462 = vpop.permute.xlu0 %461
    %v464 = vmul.f32 %v458, %v462
    %466 = vrot.lane.b32.xlu0 %v464, 32
    %v467 = vpop.permute.xlu0 %466
    %v469 = vadd.f32 %v459, %v467
    %v470 = vtanh.pop %v469
    %472 = vrot.lane.b32.xlu0 %v470, 64
    %v473 = vpop.permute.xlu0 %472
    %v475 = vmul.f32 %v458, %v473
    %vm476 = vcmp.gt.s32.totalorder %v37, 3
    %v477 = vsel %vm476, 1, 0
    %v478 = vcvt.s32.f32 %v477
    %v479 = vmul.f32 %v478, %v475
    %v480 = vadd.f32 %v372, %v479
    %s481 = scalar_lea.vmem %s0, 32
    %v482 = vld [vmem:[%s481] sm:$0xff]
    %484 = vrot.lane.b32.xlu0 %v475, 32
    %v485 = vpop.permute.xlu0 %484
    %v486 = vsel %vm48, %v485, 0
    %488 = vmatprep.subr.mxu0 0.0
    %489 = vmatpush1.msra.mxu0 %v30
    %490 = vmatprep.subr.mxu0 0.0
    %491 = vmatpush1.msra.mxu0 %v31
    %492 = vmatprep.subr.mxu0 0.0
    %493 = vmatpush1.msra.mxu0 %v32
    %494 = vmatprep.subr.mxu0 0.0
    %495 = vmatpush1.msra.mxu0 %v33
    %496 = vmatprep.subr.mxu0 0.0
    %497 = vmatpush1.msra.mxu0 0.0
    %498 = vmatprep.subr.mxu0 0.0
    %499 = vmatpush1.msra.mxu0 0.0
    %500 = vmatprep.subr.mxu0 0.0
    %501 = vmatpush1.msra.mxu0 0.0
    %502 = vmatprep.subr.mxu0 0.0
    %503 = vmatpush1.msra.mxu0 0.0
    %504 = vmatprep.subr.mxu0 0.0
    %505 = vmatpush1.msra.mxu0 0.0
    %506 = vmatprep.subr.mxu0 0.0
    %507 = vmatpush1.msra.mxu0 0.0
    %508 = vmatprep.subr.mxu0 0.0
    %509 = vmatpush1.msra.mxu0 0.0
    %510 = vmatprep.subr.mxu0 0.0
    %511 = vmatpush1.msra.mxu0 0.0
    %512 = vmatprep.subr.mxu0 0.0
    %513 = vmatpush1.msra.mxu0 0.0
    %514 = vmatprep.subr.mxu0 0.0
    %515 = vmatpush1.msra.mxu0 0.0
    %516 = vmatprep.subr.mxu0 0.0
    %517 = vmatpush1.msra.mxu0 0.0
    %518 = vmatprep.subr.mxu0 0.0
    %519 = vmatpush1.msra.mxu0 0.0
    %520 = vmatprep.subr.mxu0 0.0
    %521 = vmatpush1.msra.mxu0 0.0
    %522 = vmatprep.subr.mxu0 0.0
    %523 = vmatpush1.msra.mxu0 0.0
    %524 = vmatprep.subr.mxu0 0.0
    %525 = vmatpush1.msra.mxu0 0.0
    %526 = vmatprep.subr.mxu0 0.0
    %527 = vmatpush1.msra.mxu0 0.0
    %528 = vmatprep.subr.mxu0 0.0
    %529 = vmatpush1.msra.mxu0 0.0
    %530 = vmatprep.subr.mxu0 0.0
    %531 = vmatpush1.msra.mxu0 0.0
    %532 = vmatprep.subr.mxu0 0.0
    %533 = vmatpush1.msra.mxu0 0.0
    %534 = vmatprep.subr.mxu0 0.0
    %535 = vmatpush1.msra.mxu0 0.0
    %536 = vmatprep.subr.mxu0 0.0
    %537 = vmatpush1.msra.mxu0 0.0
    %538 = vmatprep.subr.mxu0 0.0
    %539 = vmatpush1.msra.mxu0 0.0
    %540 = vmatprep.subr.mxu0 0.0
    %541 = vmatpush1.msra.mxu0 0.0
    %542 = vmatprep.subr.mxu0 0.0
    %543 = vmatpush1.msra.mxu0 0.0
    %544 = vmatprep.subr.mxu0 0.0
    %545 = vmatpush1.msra.mxu0 0.0
    %546 = vmatprep.subr.mxu0 0.0
    %547 = vmatpush1.msra.mxu0 0.0
    %548 = vmatprep.subr.mxu0 0.0
    %549 = vmatpush1.msra.mxu0 0.0
    %550 = vmatprep.subr.mxu0 0.0
    %551 = vmatpush1.msra.mxu0 0.0
    %552 = vmatprep.mubr.f32.mxu0 0.0
    %553 = vmatmul.mubr.f32.gmra.mrb[0].mxu0 %v486
    %v554 = vpop.f32.mrb[0].mxu0
    %v555 = vadd.f32 0.0, %v554
    %v556 = vpop.f32.mrb[0].mxu0
    %557 = vdwg.mxu0
    %v558 = vadd.f32 %v482, %v555
    %v559 = vxor.u32 %v558, 2147483648
    %v560 = vmul.f32 %v559, 1.442695
    %v561 = vpow.pop %v560
    %v562 = vadd.f32 %v561, 1.0
    %v563 = vrcp.pop %v562
    %v564 = vmul.f32 1.0, %v563
    %v565 = vmul.f32 %v564, %v43
    %v566 = vadd.f32 %v565, %v44
    %v567 = vmul.f32 %v566, %v469
    %569 = vrot.lane.b32.xlu0 %v566, 64
    %v570 = vpop.permute.xlu0 %569
    %v572 = vmul.f32 %v566, %v570
    %574 = vrot.lane.b32.xlu0 %v572, 32
    %v575 = vpop.permute.xlu0 %574
    %v577 = vadd.f32 %v567, %v575
    %v578 = vtanh.pop %v577
    %580 = vrot.lane.b32.xlu0 %v578, 64
    %v581 = vpop.permute.xlu0 %580
    %v583 = vmul.f32 %v566, %v581
    %vm584 = vcmp.gt.s32.totalorder %v37, 4
    %v585 = vsel %vm584, 1, 0
    %v586 = vcvt.s32.f32 %v585
    %v587 = vmul.f32 %v586, %v583
    %v588 = vadd.f32 %v480, %v587
    %s589 = scalar_lea.vmem %s0, 40
    %v590 = vld [vmem:[%s589] sm:$0xff]
    %592 = vrot.lane.b32.xlu0 %v583, 32
    %v593 = vpop.permute.xlu0 %592
    %v594 = vsel %vm48, %v593, 0
    %596 = vmatprep.subr.mxu0 0.0
    %597 = vmatpush1.msra.mxu0 %v30
    %598 = vmatprep.subr.mxu0 0.0
    %599 = vmatpush1.msra.mxu0 %v31
    %600 = vmatprep.subr.mxu0 0.0
    %601 = vmatpush1.msra.mxu0 %v32
    %602 = vmatprep.subr.mxu0 0.0
    %603 = vmatpush1.msra.mxu0 %v33
    %604 = vmatprep.subr.mxu0 0.0
    %605 = vmatpush1.msra.mxu0 0.0
    %606 = vmatprep.subr.mxu0 0.0
    %607 = vmatpush1.msra.mxu0 0.0
    %608 = vmatprep.subr.mxu0 0.0
    %609 = vmatpush1.msra.mxu0 0.0
    %610 = vmatprep.subr.mxu0 0.0
    %611 = vmatpush1.msra.mxu0 0.0
    %612 = vmatprep.subr.mxu0 0.0
    %613 = vmatpush1.msra.mxu0 0.0
    %614 = vmatprep.subr.mxu0 0.0
    %615 = vmatpush1.msra.mxu0 0.0
    %616 = vmatprep.subr.mxu0 0.0
    %617 = vmatpush1.msra.mxu0 0.0
    %618 = vmatprep.subr.mxu0 0.0
    %619 = vmatpush1.msra.mxu0 0.0
    %620 = vmatprep.subr.mxu0 0.0
    %621 = vmatpush1.msra.mxu0 0.0
    %622 = vmatprep.subr.mxu0 0.0
    %623 = vmatpush1.msra.mxu0 0.0
    %624 = vmatprep.subr.mxu0 0.0
    %625 = vmatpush1.msra.mxu0 0.0
    %626 = vmatprep.subr.mxu0 0.0
    %627 = vmatpush1.msra.mxu0 0.0
    %628 = vmatprep.subr.mxu0 0.0
    %629 = vmatpush1.msra.mxu0 0.0
    %630 = vmatprep.subr.mxu0 0.0
    %631 = vmatpush1.msra.mxu0 0.0
    %632 = vmatprep.subr.mxu0 0.0
    %633 = vmatpush1.msra.mxu0 0.0
    %634 = vmatprep.subr.mxu0 0.0
    %635 = vmatpush1.msra.mxu0 0.0
    %636 = vmatprep.subr.mxu0 0.0
    %637 = vmatpush1.msra.mxu0 0.0
    %638 = vmatprep.subr.mxu0 0.0
    %639 = vmatpush1.msra.mxu0 0.0
    %640 = vmatprep.subr.mxu0 0.0
    %641 = vmatpush1.msra.mxu0 0.0
    %642 = vmatprep.subr.mxu0 0.0
    %643 = vmatpush1.msra.mxu0 0.0
    %644 = vmatprep.subr.mxu0 0.0
    %645 = vmatpush1.msra.mxu0 0.0
    %646 = vmatprep.subr.mxu0 0.0
    %647 = vmatpush1.msra.mxu0 0.0
    %648 = vmatprep.subr.mxu0 0.0
    %649 = vmatpush1.msra.mxu0 0.0
    %650 = vmatprep.subr.mxu0 0.0
    %651 = vmatpush1.msra.mxu0 0.0
    %652 = vmatprep.subr.mxu0 0.0
    %653 = vmatpush1.msra.mxu0 0.0
    %654 = vmatprep.subr.mxu0 0.0
    %655 = vmatpush1.msra.mxu0 0.0
    %656 = vmatprep.subr.mxu0 0.0
    %657 = vmatpush1.msra.mxu0 0.0
    %658 = vmatprep.subr.mxu0 0.0
    %659 = vmatpush1.msra.mxu0 0.0
    %660 = vmatprep.mubr.f32.mxu0 0.0
    %661 = vmatmul.mubr.f32.gmra.mrb[0].mxu0 %v594
    %v662 = vpop.f32.mrb[0].mxu0
    %v663 = vadd.f32 0.0, %v662
    %v664 = vpop.f32.mrb[0].mxu0
    %665 = vdwg.mxu0
    %v666 = vadd.f32 %v590, %v663
    %v667 = vxor.u32 %v666, 2147483648
    %v668 = vmul.f32 %v667, 1.442695
    %v669 = vpow.pop %v668
    %v670 = vadd.f32 %v669, 1.0
    %v671 = vrcp.pop %v670
    %v672 = vmul.f32 1.0, %v671
    %v673 = vmul.f32 %v672, %v43
    %v674 = vadd.f32 %v673, %v44
    %v675 = vmul.f32 %v674, %v577
    %677 = vrot.lane.b32.xlu0 %v674, 64
    %v678 = vpop.permute.xlu0 %677
    %v680 = vmul.f32 %v674, %v678
    %682 = vrot.lane.b32.xlu0 %v680, 32
    %v683 = vpop.permute.xlu0 %682
    %v685 = vadd.f32 %v675, %v683
    %v686 = vtanh.pop %v685
    %688 = vrot.lane.b32.xlu0 %v686, 64
    %v689 = vpop.permute.xlu0 %688
    %v691 = vmul.f32 %v674, %v689
    %vm692 = vcmp.gt.s32.totalorder %v37, 5
    %v693 = vsel %vm692, 1, 0
    %v694 = vcvt.s32.f32 %v693
    %v695 = vmul.f32 %v694, %v691
    %v696 = vadd.f32 %v588, %v695
    %s697 = scalar_lea.vmem %s0, 48
    %v698 = vld [vmem:[%s697] sm:$0xff]
    %700 = vrot.lane.b32.xlu0 %v691, 32
    %v701 = vpop.permute.xlu0 %700
    %v702 = vsel %vm48, %v701, 0
    %704 = vmatprep.subr.mxu0 0.0
    %705 = vmatpush1.msra.mxu0 %v30
    %706 = vmatprep.subr.mxu0 0.0
    %707 = vmatpush1.msra.mxu0 %v31
    %708 = vmatprep.subr.mxu0 0.0
    %709 = vmatpush1.msra.mxu0 %v32
    %710 = vmatprep.subr.mxu0 0.0
    %711 = vmatpush1.msra.mxu0 %v33
    %712 = vmatprep.subr.mxu0 0.0
    %713 = vmatpush1.msra.mxu0 0.0
    %714 = vmatprep.subr.mxu0 0.0
    %715 = vmatpush1.msra.mxu0 0.0
    %716 = vmatprep.subr.mxu0 0.0
    %717 = vmatpush1.msra.mxu0 0.0
    %718 = vmatprep.subr.mxu0 0.0
    %719 = vmatpush1.msra.mxu0 0.0
    %720 = vmatprep.subr.mxu0 0.0
    %721 = vmatpush1.msra.mxu0 0.0
    %722 = vmatprep.subr.mxu0 0.0
    %723 = vmatpush1.msra.mxu0 0.0
    %724 = vmatprep.subr.mxu0 0.0
    %725 = vmatpush1.msra.mxu0 0.0
    %726 = vmatprep.subr.mxu0 0.0
    %727 = vmatpush1.msra.mxu0 0.0
    %728 = vmatprep.subr.mxu0 0.0
    %729 = vmatpush1.msra.mxu0 0.0
    %730 = vmatprep.subr.mxu0 0.0
    %731 = vmatpush1.msra.mxu0 0.0
    %732 = vmatprep.subr.mxu0 0.0
    %733 = vmatpush1.msra.mxu0 0.0
    %734 = vmatprep.subr.mxu0 0.0
    %735 = vmatpush1.msra.mxu0 0.0
    %736 = vmatprep.subr.mxu0 0.0
    %737 = vmatpush1.msra.mxu0 0.0
    %738 = vmatprep.subr.mxu0 0.0
    %739 = vmatpush1.msra.mxu0 0.0
    %740 = vmatprep.subr.mxu0 0.0
    %741 = vmatpush1.msra.mxu0 0.0
    %742 = vmatprep.subr.mxu0 0.0
    %743 = vmatpush1.msra.mxu0 0.0
    %744 = vmatprep.subr.mxu0 0.0
    %745 = vmatpush1.msra.mxu0 0.0
    %746 = vmatprep.subr.mxu0 0.0
    %747 = vmatpush1.msra.mxu0 0.0
    %748 = vmatprep.subr.mxu0 0.0
    %749 = vmatpush1.msra.mxu0 0.0
    %750 = vmatprep.subr.mxu0 0.0
    %751 = vmatpush1.msra.mxu0 0.0
    %752 = vmatprep.subr.mxu0 0.0
    %753 = vmatpush1.msra.mxu0 0.0
    %754 = vmatprep.subr.mxu0 0.0
    %755 = vmatpush1.msra.mxu0 0.0
    %756 = vmatprep.subr.mxu0 0.0
    %757 = vmatpush1.msra.mxu0 0.0
    %758 = vmatprep.subr.mxu0 0.0
    %759 = vmatpush1.msra.mxu0 0.0
    %760 = vmatprep.subr.mxu0 0.0
    %761 = vmatpush1.msra.mxu0 0.0
    %762 = vmatprep.subr.mxu0 0.0
    %763 = vmatpush1.msra.mxu0 0.0
    %764 = vmatprep.subr.mxu0 0.0
    %765 = vmatpush1.msra.mxu0 0.0
    %766 = vmatprep.subr.mxu0 0.0
    %767 = vmatpush1.msra.mxu0 0.0
    %768 = vmatprep.mubr.f32.mxu0 0.0
    %769 = vmatmul.mubr.f32.gmra.mrb[0].mxu0 %v702
    %v770 = vpop.f32.mrb[0].mxu0
    %v771 = vadd.f32 0.0, %v770
    %v772 = vpop.f32.mrb[0].mxu0
    %773 = vdwg.mxu0
    %v774 = vadd.f32 %v698, %v771
    %v775 = vxor.u32 %v774, 2147483648
    %v776 = vmul.f32 %v775, 1.442695
    %v777 = vpow.pop %v776
    %v778 = vadd.f32 %v777, 1.0
    %v779 = vrcp.pop %v778
    %v780 = vmul.f32 1.0, %v779
    %v781 = vmul.f32 %v780, %v43
    %v782 = vadd.f32 %v781, %v44
    %v783 = vmul.f32 %v782, %v685
    %785 = vrot.lane.b32.xlu0 %v782, 64
    %v786 = vpop.permute.xlu0 %785
    %v788 = vmul.f32 %v782, %v786
    %790 = vrot.lane.b32.xlu0 %v788, 32
    %v791 = vpop.permute.xlu0 %790
    %v793 = vadd.f32 %v783, %v791
    %v794 = vtanh.pop %v793
    %796 = vrot.lane.b32.xlu0 %v794, 64
    %v797 = vpop.permute.xlu0 %796
    %v799 = vmul.f32 %v782, %v797
    %vm800 = vcmp.gt.s32.totalorder %v37, 6
    %v801 = vsel %vm800, 1, 0
    %v802 = vcvt.s32.f32 %v801
    %v803 = vmul.f32 %v802, %v799
    %v804 = vadd.f32 %v696, %v803
    %s805 = scalar_lea.vmem %s0, 56
    %v806 = vld [vmem:[%s805] sm:$0xff]
    %808 = vrot.lane.b32.xlu0 %v799, 32
    %v809 = vpop.permute.xlu0 %808
    %v810 = vsel %vm48, %v809, 0
    %812 = vmatprep.subr.mxu0 0.0
    %813 = vmatpush1.msra.mxu0 %v30
    %814 = vmatprep.subr.mxu0 0.0
    %815 = vmatpush1.msra.mxu0 %v31
    %816 = vmatprep.subr.mxu0 0.0
    %817 = vmatpush1.msra.mxu0 %v32
    %818 = vmatprep.subr.mxu0 0.0
    %819 = vmatpush1.msra.mxu0 %v33
    %820 = vmatprep.subr.mxu0 0.0
    %821 = vmatpush1.msra.mxu0 0.0
    %822 = vmatprep.subr.mxu0 0.0
    %823 = vmatpush1.msra.mxu0 0.0
    %824 = vmatprep.subr.mxu0 0.0
    %825 = vmatpush1.msra.mxu0 0.0
    %826 = vmatprep.subr.mxu0 0.0
    %827 = vmatpush1.msra.mxu0 0.0
    %828 = vmatprep.subr.mxu0 0.0
    %829 = vmatpush1.msra.mxu0 0.0
    %830 = vmatprep.subr.mxu0 0.0
    %831 = vmatpush1.msra.mxu0 0.0
    %832 = vmatprep.subr.mxu0 0.0
    %833 = vmatpush1.msra.mxu0 0.0
    %834 = vmatprep.subr.mxu0 0.0
    %835 = vmatpush1.msra.mxu0 0.0
    %836 = vmatprep.subr.mxu0 0.0
    %837 = vmatpush1.msra.mxu0 0.0
    %838 = vmatprep.subr.mxu0 0.0
    %839 = vmatpush1.msra.mxu0 0.0
    %840 = vmatprep.subr.mxu0 0.0
    %841 = vmatpush1.msra.mxu0 0.0
    %842 = vmatprep.subr.mxu0 0.0
    %843 = vmatpush1.msra.mxu0 0.0
    %844 = vmatprep.subr.mxu0 0.0
    %845 = vmatpush1.msra.mxu0 0.0
    %846 = vmatprep.subr.mxu0 0.0
    %847 = vmatpush1.msra.mxu0 0.0
    %848 = vmatprep.subr.mxu0 0.0
    %849 = vmatpush1.msra.mxu0 0.0
    %850 = vmatprep.subr.mxu0 0.0
    %851 = vmatpush1.msra.mxu0 0.0
    %852 = vmatprep.subr.mxu0 0.0
    %853 = vmatpush1.msra.mxu0 0.0
    %854 = vmatprep.subr.mxu0 0.0
    %855 = vmatpush1.msra.mxu0 0.0
    %856 = vmatprep.subr.mxu0 0.0
    %857 = vmatpush1.msra.mxu0 0.0
    %858 = vmatprep.subr.mxu0 0.0
    %859 = vmatpush1.msra.mxu0 0.0
    %860 = vmatprep.subr.mxu0 0.0
    %861 = vmatpush1.msra.mxu0 0.0
    %862 = vmatprep.subr.mxu0 0.0
    %863 = vmatpush1.msra.mxu0 0.0
    %864 = vmatprep.subr.mxu0 0.0
    %865 = vmatpush1.msra.mxu0 0.0
    %866 = vmatprep.subr.mxu0 0.0
    %867 = vmatpush1.msra.mxu0 0.0
    %868 = vmatprep.subr.mxu0 0.0
    %869 = vmatpush1.msra.mxu0 0.0
    %870 = vmatprep.subr.mxu0 0.0
    %871 = vmatpush1.msra.mxu0 0.0
    %872 = vmatprep.subr.mxu0 0.0
    %873 = vmatpush1.msra.mxu0 0.0
    %874 = vmatprep.subr.mxu0 0.0
    %875 = vmatpush1.msra.mxu0 0.0
    %876 = vmatprep.mubr.f32.mxu0 0.0
    %877 = vmatmul.mubr.f32.gmra.mrb[0].mxu0 %v810
    %v878 = vpop.f32.mrb[0].mxu0
    %v879 = vadd.f32 0.0, %v878
    %v880 = vpop.f32.mrb[0].mxu0
    %881 = vdwg.mxu0
    %v882 = vadd.f32 %v806, %v879
    %v883 = vxor.u32 %v882, 2147483648
    %v884 = vmul.f32 %v883, 1.442695
    %v885 = vpow.pop %v884
    %v886 = vadd.f32 %v885, 1.0
    %v887 = vrcp.pop %v886
    %v888 = vmul.f32 1.0, %v887
    %v889 = vmul.f32 %v888, %v43
    %v890 = vadd.f32 %v889, %v44
    %v891 = vmul.f32 %v890, %v793
    %893 = vrot.lane.b32.xlu0 %v890, 64
    %v894 = vpop.permute.xlu0 %893
    %v896 = vmul.f32 %v890, %v894
    %898 = vrot.lane.b32.xlu0 %v896, 32
    %v899 = vpop.permute.xlu0 %898
    %v901 = vadd.f32 %v891, %v899
    %v902 = vtanh.pop %v901
    %904 = vrot.lane.b32.xlu0 %v902, 64
    %v905 = vpop.permute.xlu0 %904
    %v907 = vmul.f32 %v890, %v905
    %vm908 = vcmp.gt.s32.totalorder %v37, 7
    %v909 = vsel %vm908, 1, 0
    %v910 = vcvt.s32.f32 %v909
    %v911 = vmul.f32 %v910, %v907
    %v912 = vadd.f32 %v804, %v911
    %v913 = vld [vmem:[%s2] sm:$0xff]
    %915 = vset.pattern.permute.xlu0 0
    %916 = vperm.xlu0 %915, %v913
    %v917 = vpop.permute.xlu0 %916
    %v919 = vmul.f32 %v912, %v917
    %v921 = vrot.slane %v919, 2
    %v923 = vadd.f32 %v919, %v921
    %v924 = vld [vmem:[%s6] sm:$0xff]
    %v925 = vld [vmem:[%s6 + $0x8] sm:$0xff]
    %v926 = vld [vmem:[%s6 + $0x10] sm:$0xff]
    %v927 = vld [vmem:[%s6 + $0x18] sm:$0xff]
    %v928 = vld [vmem:[%s7] sm:$0x1]
    %v930 = vlaneseq
    %v931 = vshrl.u32 %v930, 7
    %v932 = vsub.s32 0, %v931
    %v933 = vrot.slane %v928, %v932
    %936 = vrot.lane.b32.xlu0 %v923, 32
    %v937 = vpop.permute.xlu0 %936
    %v938 = vsel %vm48, %v937, 0
    %940 = vmatprep.subr.mxu0 0.0
    %941 = vmatpush1.msra.mxu0 %v924
    %942 = vmatprep.subr.mxu0 0.0
    %943 = vmatpush1.msra.mxu0 %v925
    %944 = vmatprep.subr.mxu0 0.0
    %945 = vmatpush1.msra.mxu0 %v926
    %946 = vmatprep.subr.mxu0 0.0
    %947 = vmatpush1.msra.mxu0 %v927
    %948 = vmatprep.subr.mxu0 0.0
    %949 = vmatpush1.msra.mxu0 0.0
    %950 = vmatprep.subr.mxu0 0.0
    %951 = vmatpush1.msra.mxu0 0.0
    %952 = vmatprep.subr.mxu0 0.0
    %953 = vmatpush1.msra.mxu0 0.0
    %954 = vmatprep.subr.mxu0 0.0
    %955 = vmatpush1.msra.mxu0 0.0
    %956 = vmatprep.subr.mxu0 0.0
    %957 = vmatpush1.msra.mxu0 0.0
    %958 = vmatprep.subr.mxu0 0.0
    %959 = vmatpush1.msra.mxu0 0.0
    %960 = vmatprep.subr.mxu0 0.0
    %961 = vmatpush1.msra.mxu0 0.0
    %962 = vmatprep.subr.mxu0 0.0
    %963 = vmatpush1.msra.mxu0 0.0
    %964 = vmatprep.subr.mxu0 0.0
    %965 = vmatpush1.msra.mxu0 0.0
    %966 = vmatprep.subr.mxu0 0.0
    %967 = vmatpush1.msra.mxu0 0.0
    %968 = vmatprep.subr.mxu0 0.0
    %969 = vmatpush1.msra.mxu0 0.0
    %970 = vmatprep.subr.mxu0 0.0
    %971 = vmatpush1.msra.mxu0 0.0
    %972 = vmatprep.subr.mxu0 0.0
    %973 = vmatpush1.msra.mxu0 0.0
    %974 = vmatprep.subr.mxu0 0.0
    %975 = vmatpush1.msra.mxu0 0.0
    %976 = vmatprep.subr.mxu0 0.0
    %977 = vmatpush1.msra.mxu0 0.0
    %978 = vmatprep.subr.mxu0 0.0
    %979 = vmatpush1.msra.mxu0 0.0
    %980 = vmatprep.subr.mxu0 0.0
    %981 = vmatpush1.msra.mxu0 0.0
    %982 = vmatprep.subr.mxu0 0.0
    %983 = vmatpush1.msra.mxu0 0.0
    %984 = vmatprep.subr.mxu0 0.0
    %985 = vmatpush1.msra.mxu0 0.0
    %986 = vmatprep.subr.mxu0 0.0
    %987 = vmatpush1.msra.mxu0 0.0
    %988 = vmatprep.subr.mxu0 0.0
    %989 = vmatpush1.msra.mxu0 0.0
    %990 = vmatprep.subr.mxu0 0.0
    %991 = vmatpush1.msra.mxu0 0.0
    %992 = vmatprep.subr.mxu0 0.0
    %993 = vmatpush1.msra.mxu0 0.0
    %994 = vmatprep.subr.mxu0 0.0
    %995 = vmatpush1.msra.mxu0 0.0
    %996 = vmatprep.subr.mxu0 0.0
    %997 = vmatpush1.msra.mxu0 0.0
    %998 = vmatprep.subr.mxu0 0.0
    %999 = vmatpush1.msra.mxu0 0.0
    %1000 = vmatprep.subr.mxu0 0.0
    %1001 = vmatpush1.msra.mxu0 0.0
    %1002 = vmatprep.subr.mxu0 0.0
    %1003 = vmatpush1.msra.mxu0 0.0
    %1004 = vmatprep.mubr.f32.mxu0 0.0
    %1005 = vmatmul.mubr.f32.gmra.mrb[0].mxu0 %v938
    %v1006 = vpop.f32.mrb[0].mxu0
    %v1007 = vadd.f32 %v933, %v1006
    %v1008 = vpop.f32.mrb[0].mxu0
    %1009 = vdwg.mxu0
    %vm1010 = vcmask 9216
    %1011 = vst.msk [vmem:[#allocation2] sm:$0x3] %vm1010, %v1007
    // Predicated region
    $region34: #{ppinet_forward.1} parent=1 // pred_check
      _
    $region35: #{ppinet_forward.1} parent=1 // pred_check_branch
      %1013 = sbr.rel (0) target = $region37
    $region36: #{ppinet_forward.1} parent=1 // pred_region
      %s1015 = ssub.s32 32, 32
      %1016 = vsyncadd [#allocation3], %s1015
      %s1018 = sshll.u32 [#allocation2], 4
      %s1019 = int_to_ptr.vmem [resolvable:$true] %s1018
      %1021 = dma.vmem_to_hbm [thread:$0]  %s1019, 32, %s8, [#allocation3]
    $region37: #{ppinet_forward.1} parent=1 // pred_fallthru
      _
    // Predicated region
    $region38: #{ppinet_forward.1} parent=1 // pred_check
      _
    $region39: #{ppinet_forward.1} parent=1 // pred_check_branch
      %1023 = sbr.rel (0) target = $region41
    $region40: #{ppinet_forward.1} parent=1 // pred_region
      %1024 = dma.done [#allocation3], 32
    $region41: #{ppinet_forward.1} parent=1 // pred_fallthru
      _
    %1025 = vsyncpa [#allocation3], 1

</llo_original>
